<compile_context>
chip_gen: v7x
topology: tpu7x:2x2x1
jax: 0.10.0
libtpu: 0.0.40
codegen_flags: <defaults>
</compile_context>

<pallas_src>
import functools

import jax
import jax.numpy as jnp
from jax import lax
from jax.experimental import pallas as pl
from jax.experimental.pallas import tpu as pltpu


def _round_up(x, m):
    return (x + m - 1) // m * m


def _sublane(dtype):
    # sublane packing granularity: 8 rows for 32-bit, 16 for 16-bit, 32 for 8-bit
    return max(8, 32 // jnp.dtype(dtype).itemsize)


def causconv1d_kernel(prev_ref, cur_ref, w_ref, b_ref, o_ref, *, k, dilation):
    # prev_ref: (1, Cin_p, Wp)     last Wp input frames before this time tile
    # cur_ref : (1, Cin_p, TL)     current time tile (time in lanes)
    # w_ref   : (k, Cout_p, Cin_p) per-tap weight matrices (compute_dtype)
    # b_ref   : (Cout_p, 1)        bias, f32
    # o_ref   : (1, Cout_p, TL)    output tile, already NCL-oriented
    pad = (k - 1) * dilation
    tl = cur_ref.shape[-1]
    wp = prev_ref.shape[-1]

    # Halo = [previous Wp frames | current TL frames]; both pieces are
    # 128-lane aligned so the concat is cheap.  Per-tap windows are static
    # lane-shifted slices of the halo (XLU work, off the critical VPU slot).
    halo = jnp.concatenate([prev_ref[0], cur_ref[0]], axis=-1)  # (Cin_p, Wp+TL)
    base = wp - pad

    acc = jnp.dot(w_ref[0], halo[:, base:base + tl],
                  preferred_element_type=jnp.float32)
    for j in range(1, k):
        off = base + j * dilation
        acc = acc + jnp.dot(w_ref[j], halo[:, off:off + tl],
                            preferred_element_type=jnp.float32)

    # Fused bias add + cast, straight into the output store (f32 accumulation
    # even when compute/out dtype is bf16).
    acc = acc + b_ref[...]            # (Cout_p, 1) broadcasts over the lanes
    o_ref[0] = acc.astype(o_ref.dtype)


def caus_conv1d(x, weight, bias, dilation=1, *, compute_dtype=jnp.float32,
                out_dtype=jnp.float32, time_tile=512):
    """Causal 1D conv matching the PyTorch CausConv1d forward.

    x:      (N, Cin, L)   float32 (PyTorch NCL layout)
    weight: (Cout, Cin, k)
    bias:   (Cout,)
    returns (N, Cout, L)  out_dtype
    """
    N, Cin, L = x.shape
    Cout, _, k = weight.shape
    pad = (k - 1) * dilation
    out_dtype = jnp.dtype(out_dtype)
    compute_dtype = jnp.dtype(compute_dtype)

    # Channel padding to the sublane packing granularity of each dtype.
    cin_p = _round_up(Cin, _sublane(compute_dtype))
    cout_p = _round_up(Cout, _sublane(out_dtype))

    # Halo block width (lanes) must cover `pad` and stay 128-aligned.
    wp = max(128, _round_up(pad, 128))

    # Time tile: multiple of 128 lanes (and of wp), large by default to
    # amortize per-grid-step overhead.
    TL = max(128, min(_round_up(time_tile, 128), _round_up(L, 128)))
    TL = _round_up(max(TL, wp), wp)
    if N == 1:
        # v7x shards "parallel" grid axes across 2 TensorCores: make sure
        # there are >= 2 grid steps when the batch alone can't provide them.
        while TL > wp and _round_up(L, TL) // TL < 2:
            TL = max(wp, _round_up(TL // 2, wp))
    Lp = _round_up(L, TL)

    # Cast BEFORE building the padded intermediate (halves bytes for bf16).
    # Input keeps its native (N, C, L) layout: time in lanes, no transpose,
    # left-padded by one full tile of zeros (the causal pad lives in there).
    x_p = jnp.pad(x.astype(compute_dtype),
                  ((0, 0), (0, cin_p - Cin), (TL, Lp - L)))

    # Per-tap weight matrices: w3[j] = weight[:, :, j]  -> (k, Cout_p, Cin_p)
    w3 = jnp.pad(jnp.transpose(weight, (2, 0, 1)).astype(compute_dtype),
                 ((0, 0), (0, cout_p - Cout), (0, cin_p - Cin)))
    b2 = jnp.pad(bias.astype(jnp.float32), (0, cout_p - Cout)).reshape(cout_p, 1)

    blocks_per_tile = TL // wp  # prev-halo block index stride along time

    kern = functools.partial(causconv1d_kernel, k=k, dilation=dilation)
    out = pl.pallas_call(
        kern,
        out_shape=jax.ShapeDtypeStruct((N, cout_p, Lp), out_dtype),
        grid=(N, Lp // TL),
        in_specs=[
            # Narrow halo block: the wp lanes ending exactly where this
            # output tile starts (all zeros for the first tile).
            pl.BlockSpec((1, cin_p, wp),
                         lambda n, l: (n, 0, (l + 1) * blocks_per_tile - 1)),
            # Current time tile (offset by the TL-wide left zero pad).
            pl.BlockSpec((1, cin_p, TL), lambda n, l: (n, 0, l + 1)),
            # Grid-invariant folded weights and bias (tiny).
            pl.BlockSpec((k, cout_p, cin_p), lambda n, l: (0, 0, 0)),
            pl.BlockSpec((cout_p, 1), lambda n, l: (0, 0)),
        ],
        out_specs=pl.BlockSpec((1, cout_p, TL), lambda n, l: (n, 0, l)),
        compiler_params=pltpu.CompilerParams(
            dimension_semantics=("parallel", "parallel")),
    )(x_p, x_p, w3, b2)

    # Output is already NCL; just slice off channel / time padding.
    return out[:, :Cout, :L]


def reference_caus_conv1d(x, weight, bias, dilation=1):
    """Pure-JAX reference matching the PyTorch module exactly."""
    k = weight.shape[2]
    pad = (k - 1) * dilation
    y = lax.conv_general_dilated(
        x, weight,
        window_strides=(1,),
        padding=[(pad, pad)],
        rhs_dilation=(dilation,),
        dimension_numbers=("NCH", "OIH", "NCH"),
        precision=lax.Precision.HIGHEST)
    y = y + bias[None, :, None]
    if pad > 0:  # guard: pad==0 (k==1) would otherwise slice to empty
        y = y[:, :, :-pad]
    return y


if __name__ == "__main__":
    key = jax.random.PRNGKey(0)
    k_x, k_w, k_b = jax.random.split(key, 3)

    # --- test 1: f32 compute, dilation=1, single time tile ---
    N, Cin, Cout, L, ksize = 2, 4, 8, 128, 3
    x = jax.random.normal(k_x, (N, Cin, L), dtype=jnp.float32)
    weight = jax.random.normal(k_w, (Cout, Cin, ksize), dtype=jnp.float32) * 0.1
    bias = jax.random.normal(k_b, (Cout,), dtype=jnp.float32) * 0.1

    out = jax.block_until_ready(caus_conv1d(x, weight, bias, dilation=1))
    ref = jax.block_until_ready(reference_caus_conv1d(x, weight, bias, dilation=1))
    assert out.shape == (N, Cout, L), out.shape
    assert jnp.allclose(out, ref, atol=1e-3, rtol=1e-3), float(
        jnp.max(jnp.abs(out - ref)))

    # --- test 2: bf16 compute AND bf16 output, dilation=2 (f32 accumulation) ---
    out_bf = jax.block_until_ready(
        caus_conv1d(x, weight, bias, dilation=2,
                    compute_dtype=jnp.bfloat16, out_dtype=jnp.bfloat16))
    ref_d2 = jax.block_until_ready(
        reference_caus_conv1d(x, weight, bias, dilation=2))
    assert out_bf.shape == (N, Cout, L), out_bf.shape
    assert out_bf.dtype == jnp.bfloat16
    assert jnp.allclose(out_bf.astype(jnp.float32), ref_d2,
                        atol=3e-2, rtol=3e-2), float(
        jnp.max(jnp.abs(out_bf.astype(jnp.float32) - ref_d2)))

    # --- test 3: multi time tile, halo crossing tile boundaries, N=1,
    #             L not a multiple of the tile, larger dilation ---
    N3, Cin3, Cout3, L3, k3, d3 = 1, 3, 5, 300, 4, 3
    x3 = jax.random.normal(k_x, (N3, Cin3, L3), dtype=jnp.float32)
    w3 = jax.random.normal(k_w, (Cout3, Cin3, k3), dtype=jnp.float32) * 0.1
    b3 = jax.random.normal(k_b, (Cout3,), dtype=jnp.float32) * 0.1
    out3 = jax.block_until_ready(
        caus_conv1d(x3, w3, b3, dilation=d3, time_tile=128))
    ref3 = jax.block_until_ready(reference_caus_conv1d(x3, w3, b3, dilation=d3))
    assert out3.shape == (N3, Cout3, L3), out3.shape
    assert jnp.allclose(out3, ref3, atol=1e-3, rtol=1e-3), float(
        jnp.max(jnp.abs(out3 - ref3)))

    print("KERNEL_OK")
</pallas_src>

<mosaic_0001>
module attributes {stable_mosaic.version = 11 : i64} {
  func.func @causconv1d_kernel(%arg0: i32, %arg1: i32, %arg2: memref<1x8x128xf32, #tpu.memory_space<vmem>>, %arg3: memref<1x8x128xf32, #tpu.memory_space<vmem>>, %arg4: memref<3x8x8xf32, #tpu.memory_space<vmem>>, %arg5: memref<8x1xf32, #tpu.memory_space<vmem>>, %arg6: memref<1x8x128xf32, #tpu.memory_space<vmem>>) attributes {dimension_semantics = [#tpu.dimension_semantics<parallel>, #tpu.dimension_semantics<parallel>], iteration_bounds = array<i64: 2, 1>, scalar_prefetch = 0 : i64, scratch_operands = 0 : i64, tpu.core_type = #tpu.core_type<tc>, window_params = [{transform_indices = @transform_0, window_bounds = array<i64: 1, 8, 128>}, {transform_indices = @transform_1, window_bounds = array<i64: 1, 8, 128>}, {pipeline_mode = #tpu.pipeline_mode<synchronous>, transform_indices = @transform_2, window_bounds = array<i64: 3, 8, 8>}, {pipeline_mode = #tpu.pipeline_mode<synchronous>, transform_indices = @transform_3, window_bounds = array<i64: 8, 1>}, {transform_indices = @transform_4, window_bounds = array<i64: 1, 8, 128>}]} {
    %c0 = arith.constant 0 : index
    %c0_0 = arith.constant 0 : index
    %c0_1 = arith.constant 0 : index
    %0 = vector.load %arg2[%c0, %c0_0, %c0_1] : memref<1x8x128xf32, #tpu.memory_space<vmem>>, vector<1x8x128xf32>
    %1 = vector.shape_cast %0 : vector<1x8x128xf32> to vector<8x128xf32>
    %c0_2 = arith.constant 0 : index
    %c0_3 = arith.constant 0 : index
    %c0_4 = arith.constant 0 : index
    %2 = vector.load %arg3[%c0_2, %c0_3, %c0_4] : memref<1x8x128xf32, #tpu.memory_space<vmem>>, vector<1x8x128xf32>
    %3 = vector.shape_cast %2 : vector<1x8x128xf32> to vector<8x128xf32>
    %4 = tpu.concatenate %1, %3 in 1 : vector<8x128xf32>, vector<8x128xf32> -> vector<8x256xf32>
    %c0_5 = arith.constant 0 : index
    %c0_6 = arith.constant 0 : index
    %c0_7 = arith.constant 0 : index
    %5 = vector.load %arg4[%c0_5, %c0_6, %c0_7] : memref<3x8x8xf32, #tpu.memory_space<vmem>>, vector<1x8x8xf32>
    %6 = vector.shape_cast %5 : vector<1x8x8xf32> to vector<8x8xf32>
    %7 = vector.extract_strided_slice %4 {offsets = [0, 126], sizes = [8, 128], strides = [1, 1]} : vector<8x256xf32> to vector<8x128xf32>
    %cst = arith.constant dense<0.000000e+00> : vector<8x128xf32>
    %8 = tpu.matmul %6, %7, %cst {dimension_numbers = #tpu.dot_dimension_numbers<[1], [0], [0], [1], [0, 0, 1, 1], [], []>} : vector<8x8xf32>, vector<8x128xf32>, vector<8x128xf32> -> vector<8x128xf32>
    %c1 = arith.constant 1 : index
    %c0_8 = arith.constant 0 : index
    %c0_9 = arith.constant 0 : index
    %9 = vector.load %arg4[%c1, %c0_8, %c0_9] : memref<3x8x8xf32, #tpu.memory_space<vmem>>, vector<1x8x8xf32>
    %10 = vector.shape_cast %9 : vector<1x8x8xf32> to vector<8x8xf32>
    %11 = vector.extract_strided_slice %4 {offsets = [0, 127], sizes = [8, 128], strides = [1, 1]} : vector<8x256xf32> to vector<8x128xf32>
    %cst_10 = arith.constant dense<0.000000e+00> : vector<8x128xf32>
    %12 = tpu.matmul %10, %11, %cst_10 {dimension_numbers = #tpu.dot_dimension_numbers<[1], [0], [0], [1], [0, 0, 1, 1], [], []>} : vector<8x8xf32>, vector<8x128xf32>, vector<8x128xf32> -> vector<8x128xf32>
    %13 = arith.addf %8, %12 : vector<8x128xf32>
    %c2 = arith.constant 2 : index
    %c0_11 = arith.constant 0 : index
    %c0_12 = arith.constant 0 : index
    %14 = vector.load %arg4[%c2, %c0_11, %c0_12] : memref<3x8x8xf32, #tpu.memory_space<vmem>>, vector<1x8x8xf32>
    %15 = vector.shape_cast %14 : vector<1x8x8xf32> to vector<8x8xf32>
    %16 = vector.extract_strided_slice %4 {offsets = [0, 128], sizes = [8, 128], strides = [1, 1]} : vector<8x256xf32> to vector<8x128xf32>
    %cst_13 = arith.constant dense<0.000000e+00> : vector<8x128xf32>
    %17 = tpu.matmul %15, %16, %cst_13 {dimension_numbers = #tpu.dot_dimension_numbers<[1], [0], [0], [1], [0, 0, 1, 1], [], []>} : vector<8x8xf32>, vector<8x128xf32>, vector<8x128xf32> -> vector<8x128xf32>
    %18 = arith.addf %13, %17 : vector<8x128xf32>
    %c0_14 = arith.constant 0 : index
    %c0_15 = arith.constant 0 : index
    %19 = vector.load %arg5[%c0_14, %c0_15] : memref<8x1xf32, #tpu.memory_space<vmem>>, vector<8x1xf32>
    %20 = vector.broadcast %19 : vector<8x1xf32> to vector<8x128xf32>
    %21 = arith.addf %18, %20 : vector<8x128xf32>
    %c0_16 = arith.constant 0 : index
    %c0_17 = arith.constant 0 : index
    %c0_18 = arith.constant 0 : index
    %22 = vector.load %arg6[%c0_16, %c0_17, %c0_18] : memref<1x8x128xf32, #tpu.memory_space<vmem>>, vector<1x8x128xf32>
    %23 = vector.shape_cast %22 : vector<1x8x128xf32> to vector<8x128xf32>
    %24 = vector.shape_cast %21 : vector<8x128xf32> to vector<1x8x128xf32>
    tpu.vector_store %arg6[%c0_16, %c0_17, %c0_18], %24 {strides = array<i32>} : memref<1x8x128xf32, #tpu.memory_space<vmem>>, vector<1x8x128xf32>,
    return
  }
  func.func @transform_0(%arg0: i32, %arg1: i32) -> (i32, i32, i32) {
    %c1_i32 = arith.constant 1 : i32
    %0 = arith.addi %arg1, %c1_i32 : i32
    %c1_i32_0 = arith.constant 1 : i32
    %1 = arith.muli %0, %c1_i32_0 : i32
    %c1_i32_1 = arith.constant 1 : i32
    %2 = arith.subi %1, %c1_i32_1 : i32
    %c0_i32 = arith.constant 0 : i32
    %c0_i32_2 = arith.constant 0 : i32
    return %arg0, %c0_i32, %2 : i32, i32, i32
  }
  func.func @transform_1(%arg0: i32, %arg1: i32) -> (i32, i32, i32) {
    %c1_i32 = arith.constant 1 : i32
    %0 = arith.addi %arg1, %c1_i32 : i32
    %c0_i32 = arith.constant 0 : i32
    %c0_i32_0 = arith.constant 0 : i32
    return %arg0, %c0_i32, %0 : i32, i32, i32
  }
  func.func @transform_2(%arg0: i32, %arg1: i32) -> (i32, i32, i32) {
    %c0_i32 = arith.constant 0 : i32
    %c0_i32_0 = arith.constant 0 : i32
    %c0_i32_1 = arith.constant 0 : i32
    %c0_i32_2 = arith.constant 0 : i32
    return %c0_i32, %c0_i32_0, %c0_i32_1 : i32, i32, i32
  }
  func.func @transform_3(%arg0: i32, %arg1: i32) -> (i32, i32) {
    %c0_i32 = arith.constant 0 : i32
    %c0_i32_0 = arith.constant 0 : i32
    %c0_i32_1 = arith.constant 0 : i32
    return %c0_i32, %c0_i32_0 : i32, i32
  }
  func.func @transform_4(%arg0: i32, %arg1: i32) -> (i32, i32, i32) {
    %c0_i32 = arith.constant 0 : i32
    %c0_i32_0 = arith.constant 0 : i32
    return %arg0, %c0_i32, %arg1 : i32, i32, i32
  }
}

</mosaic_0001>

<llo_original>
// kernel: tpu_custom_call.1
$region0: #{tpu_custom_call.1}
  #allocation0 [shape = 'u32[]', space=smem, size = 0x4, offset = 0x4, fixed_abs, tag = 'smem constant byte address 0x4 - core index']
  #allocation1 [shape = 'u32[144,128]{1,0:T(1,128)}', space=vmem, size = 0x12000, scoped, tag = 'internal scratch']
  %s0 = inlined_call_operand.hbm [shape: f32[2,8,256], index: 0, kind: input, shape index: {}]
  %s1 = inlined_call_operand.hbm [shape: f32[2,8,256], index: 1, kind: input, shape index: {}]
  %s2 = inlined_call_operand.hbm [shape: f32[3,8,8], index: 2, kind: input, shape index: {}]
  %s3 = inlined_call_operand.vmem [shape: f32[8,1], index: 3, kind: input, shape index: {}]
  %s4 = inlined_call_operand.hbm [shape: f32[2,8,128], index: 4, kind: output, shape index: {}]
  %s5 = sld [smem:[#allocation0]]
  $region61: #{tpu_custom_call.1} parent=0
    _
  %s7 = ssub.s32 1, %s5
  %s8 = scalar_select 0, %s7, %s5
  $region1: #{tpu_custom_call.1} parent=0
    #allocation2 [shape = 'u8[8192]{0}', space=vmem, size = 0x2000, scoped, tag = 'input window, operand 0']
    #allocation3 [shape = 's32[2]{0}', space=sflag, size = 0x8, scoped, tag = 'scoped memory for tpu_custom_call.1']
    #allocation4 [shape = 's32[2]{0}', space=sflag, size = 0x8, scoped, tag = 'scoped memory for tpu_custom_call.1']
    #allocation5 [shape = 'u8[8192]{0}', space=vmem, size = 0x2000, scoped, tag = 'input window, operand 1']
    #allocation6 [shape = 's32[2]{0}', space=sflag, size = 0x8, scoped, tag = 'scoped memory for tpu_custom_call.1']
    #allocation7 [shape = 'u8[12288]{0}', space=vmem, size = 0x3000, scoped, tag = 'input window, operand 2, single buffered']
    #allocation8 [shape = 'u8[8192]{0}', space=vmem, size = 0x2000, scoped, tag = 'output window, operand 0']
    %9 = vsyncpa [#allocation3], 0
    %s10 = scalar_lea.sflag [#allocation3], 1
    %11 = vsyncpa %s10, 0
    %12 = vsyncpa [#allocation6], 0
    %s13 = scalar_lea.sflag [#allocation6], 1
    %14 = vsyncpa %s13, 0
    %15 = vsyncpa [#allocation4], 0
    %s16 = scalar_lea.sflag [#allocation4], 1
    %17 = vsyncpa %s16, 0
    loop: start=0, step=1, limit=4
    $region2: #{tpu_custom_call.1} parent=1 // loop_pre_header
      _
    $region3: #{tpu_custom_call.1} parent=1 // loop_header
      %s19 = sphi 0, %s23
      %p20 = scmp.ge.s32.totalorder %s19, 4
      %s26 = sphi 0, %s38
      %s27 = sphi 0, %s34
      %s28 = sphi 0, %s26
      %s29 = sphi 0, %s27
      %s30 = sphi 0, %s28
      %s31 = sphi 0, %s29
      %s43 = sphi 0, %s45
      %s46 = sphi 0, %s43
      %s47 = sphi 0, %s46
      %s63 = sphi 0, %s47
      %s73 = sphi 0, %s75
      %s76 = sphi 0, %s73
      %s77 = sphi 0, %s76
      %s93 = sphi 0, %s77
      %s97 = sphi 0, %s97
      %s99 = sphi 0, %s97
      %s100 = sphi 0, %s99
      %s114 = sphi 0, %s100
      %s118 = sphi 0, %s118
      %s120 = sphi 0, %s118
      %s121 = sphi 0, %s120
      %s135 = sphi 0, %s121
      %s143 = sphi 0, %s145
      %s146 = sphi 0, %s143
      %s147 = sphi 0, %s146
      %s163 = sphi 0, %s147
    $region4: #{tpu_custom_call.1} parent=1 // loop_header_branch
      %22 = sbr.rel (%p20) target = $region8
    $region5: #{tpu_custom_call.1} parent=1 // loop_body
      %s24 = ssub.s32 %s19, 1
      %s25 = ssub.s32 %s19, 2
      %s32 = sadd.s32 1, %s27
      %p33 = scmp.ge.s32.totalorder %s32, 1
      %s34 = scalar_select %p33, 0, %s32
      %s35 = sadd.s32 1, %s26
      %s36 = scalar_select %p33, %s35, %s26
      %p37 = scmp.ge.s32.totalorder %s36, 2
      %s38 = scalar_select %p37, 0, %s36
      %s39 = ssub.s32 %s26, %s38
      %s40 = ssub.s32 %s27, %s34
      %s41 = sor.u32 %s39, %s40
      %p42 = scmp.eq.s32.totalorder %s41, 0
      %s44 = sadd.s32 %s43, 1
      %s45 = scalar_select %p42, %s43, %s44
      %p48 = pneg %p42
      %p49 = scmp.eq.s32.totalorder %s19, 1
      %p50 = por %p48, %p49
      %p51 = scmp.ne.s32.totalorder %s43, %s46
      %p52 = scmp.eq.s32.totalorder %s19, 0
      %p53 = por %p51, %p52
      %p54 = scmp.ne.s32.totalorder %s43, %s46
      %p55 = scmp.eq.s32.totalorder %s24, 1
      %p56 = por %p54, %p55
      %p57 = scmp.ne.s32.totalorder %s46, %s47
      %p58 = scmp.eq.s32.totalorder %s24, 0
      %p59 = por %p57, %p58
      %p60 = scmp.ne.s32.totalorder %s46, %s47
      %p61 = scmp.eq.s32.totalorder %s25, 1
      %p62 = por %p60, %p61
      %p64 = scmp.ne.s32.totalorder %s47, %s63
      %p65 = scmp.eq.s32.totalorder %s25, 0
      %p66 = por %p64, %p65
      %s67 = sadd.s32 %s27, 1
      %s68 = sadd.s32 %s34, 1
      %s69 = ssub.s32 %s26, %s38
      %s70 = ssub.s32 %s67, %s68
      %s71 = sor.u32 %s69, %s70
      %p72 = scmp.eq.s32.totalorder %s71, 0
      %s74 = sadd.s32 %s73, 1
      %s75 = scalar_select %p72, %s73, %s74
      %p78 = pneg %p72
      %p79 = scmp.eq.s32.totalorder %s19, 1
      %p80 = por %p78, %p79
      %p81 = scmp.ne.s32.totalorder %s73, %s76
      %p82 = scmp.eq.s32.totalorder %s19, 0
      %p83 = por %p81, %p82
      %p84 = scmp.ne.s32.totalorder %s73, %s76
      %p85 = scmp.eq.s32.totalorder %s24, 1
      %p86 = por %p84, %p85
      %p87 = scmp.ne.s32.totalorder %s76, %s77
      %p88 = scmp.eq.s32.totalorder %s24, 0
      %p89 = por %p87, %p88
      %p90 = scmp.ne.s32.totalorder %s76, %s77
      %p91 = scmp.eq.s32.totalorder %s25, 1
      %p92 = por %p90, %p91
      %p94 = scmp.ne.s32.totalorder %s77, %s93
      %p95 = scmp.eq.s32.totalorder %s25, 0
      %p96 = por %p94, %p95
      %s98 = sadd.s32 %s97, 1
      %p101 = scmp.eq.s32.totalorder %s19, 1
      %p102 = scmp.ne.s32.totalorder %s97, %s99
      %p103 = scmp.eq.s32.totalorder %s19, 0
      %p104 = por %p102, %p103
      %p105 = scmp.ne.s32.totalorder %s97, %s99
      %p106 = scmp.eq.s32.totalorder %s24, 1
      %p107 = por %p105, %p106
      %p108 = scmp.ne.s32.totalorder %s99, %s100
      %p109 = scmp.eq.s32.totalorder %s24, 0
      %p110 = por %p108, %p109
      %p111 = scmp.ne.s32.totalorder %s99, %s100
      %p112 = scmp.eq.s32.totalorder %s25, 1
      %p113 = por %p111, %p112
      %p115 = scmp.ne.s32.totalorder %s100, %s114
      %p116 = scmp.eq.s32.totalorder %s25, 0
      %p117 = por %p115, %p116
      %s119 = sadd.s32 %s118, 1
      %p122 = scmp.eq.s32.totalorder %s19, 1
      %p123 = scmp.ne.s32.totalorder %s118, %s120
      %p124 = scmp.eq.s32.totalorder %s19, 0
      %p125 = por %p123, %p124
      %p126 = scmp.ne.s32.totalorder %s118, %s120
      %p127 = scmp.eq.s32.totalorder %s24, 1
      %p128 = por %p126, %p127
      %p129 = scmp.ne.s32.totalorder %s120, %s121
      %p130 = scmp.eq.s32.totalorder %s24, 0
      %p131 = por %p129, %p130
      %p132 = scmp.ne.s32.totalorder %s120, %s121
      %p133 = scmp.eq.s32.totalorder %s25, 1
      %p134 = por %p132, %p133
      %p136 = scmp.ne.s32.totalorder %s121, %s135
      %p137 = scmp.eq.s32.totalorder %s25, 0
      %p138 = por %p136, %p137
      %s139 = ssub.s32 %s26, %s38
      %s140 = ssub.s32 %s27, %s34
      %s141 = sor.u32 %s139, %s140
      %p142 = scmp.eq.s32.totalorder %s141, 0
      %s144 = sadd.s32 %s143, 1
      %s145 = scalar_select %p142, %s143, %s144
      %p148 = pneg %p142
      %p149 = scmp.eq.s32.totalorder %s19, 1
      %p150 = por %p148, %p149
      %p151 = scmp.ne.s32.totalorder %s143, %s146
      %p152 = scmp.eq.s32.totalorder %s19, 0
      %p153 = por %p151, %p152
      %p154 = scmp.ne.s32.totalorder %s143, %s146
      %p155 = scmp.eq.s32.totalorder %s24, 1
      %p156 = por %p154, %p155
      %p157 = scmp.ne.s32.totalorder %s146, %s147
      %p158 = scmp.eq.s32.totalorder %s24, 0
      %p159 = por %p157, %p158
      %p160 = scmp.ne.s32.totalorder %s146, %s147
      %p161 = scmp.eq.s32.totalorder %s25, 1
      %p162 = por %p160, %p161
      %p164 = scmp.ne.s32.totalorder %s147, %s163
      %p165 = scmp.eq.s32.totalorder %s25, 0
      %p166 = por %p164, %p165
      %p167 = scmp.le.s32.totalorder 1, %s19
      %p168 = scmp.lt.s32.totalorder %s19, 3
      %p169 = pnand %p167, %p168
      %p170 = pneg %p169
      // Predicated region
      $region9: #{tpu_custom_call.1} parent=5 // pred_check
        _
      $region10: #{tpu_custom_call.1} parent=5 // pred_check_branch
        %172 = sbr.rel (%p169) target = $region12
      $region11: #{tpu_custom_call.1} parent=5 // pred_region
        %s173 = ssub.s32 %s19, 1
        // Predicated region
        $region13: #{tpu_custom_call.1} parent=11 // pred_check
          %p174 = pneg %p110
        $region14: #{tpu_custom_call.1} parent=11 // pred_check_branch
          %176 = sbr.rel (%p174) target = $region16
        $region15: #{tpu_custom_call.1} parent=11 // pred_region
          %s178 = ssub.s32 384, 384
          %179 = vsyncadd [#allocation6], %s178
          %s180 = sshll.u32 [#allocation7], 4
          %s181 = int_to_ptr.vmem [resolvable:$true] %s180
          %186 = dma.hbm_to_vmem [thread:$0]  %s2, 384, %s181, [#allocation6], 128, 128, 8
        $region16: #{tpu_custom_call.1} parent=11 // pred_fallthru
          _
        // Predicated region
        $region17: #{tpu_custom_call.1} parent=11 // pred_check
          %p187 = pneg %p131
        $region18: #{tpu_custom_call.1} parent=11 // pred_check_branch
          %189 = sbr.rel (%p187) target = $region20
        $region19: #{tpu_custom_call.1} parent=11 // pred_region
          _
        $region20: #{tpu_custom_call.1} parent=11 // pred_fallthru
          _
      $region12: #{tpu_custom_call.1} parent=5 // pred_fallthru
        _
      %p190 = scmp.lt.s32.totalorder %s19, 2
      // Predicated region
      $region21: #{tpu_custom_call.1} parent=5 // pred_check
        %p191 = pneg %p190
      $region22: #{tpu_custom_call.1} parent=5 // pred_check_branch
        %193 = sbr.rel (%p191) target = $region24
      $region23: #{tpu_custom_call.1} parent=5 // pred_region
        // Predicated region
        $region25: #{tpu_custom_call.1} parent=23 // pred_check
          %p194 = pneg %p53
        $region26: #{tpu_custom_call.1} parent=23 // pred_check_branch
          %196 = sbr.rel (%p194) target = $region28
        $region27: #{tpu_custom_call.1} parent=23 // pred_region
          %s197 = sand.u32 %s43, 1
          %s198 = scalar_lea.sflag [#allocation3], %s197
          %s199 = sand.u32 %s43, 1
          %s200 = smul.addr %s199, 8
          %s201 = scalar_lea.vmem [#allocation2], %s200
          %s203 = ssub.s32 128, 128
          %204 = vsyncadd %s198, %s203
          %s205 = smul.addr %s26, 2
          %s206 = sadd.s32 %s27, %s205
          %s207 = smul.addr %s206, 128
          %s208 = scalar_lea.hbm %s0, %s207
          %s210 = sshll.u32 %s201, 4
          %s211 = int_to_ptr.vmem [resolvable:$true] %s210
          %213 = dma.hbm_to_vmem [thread:$0]  %s208, 128, %s211, %s198
        $region28: #{tpu_custom_call.1} parent=23 // pred_fallthru
          _
        // Predicated region
        $region29: #{tpu_custom_call.1} parent=23 // pred_check
          %p214 = pneg %p83
        $region30: #{tpu_custom_call.1} parent=23 // pred_check_branch
          %216 = sbr.rel (%p214) target = $region32
        $region31: #{tpu_custom_call.1} parent=23 // pred_region
          %s217 = sand.u32 %s19, 1
          %s218 = scalar_lea.sflag [#allocation6], %s217
          %s219 = sand.u32 %s73, 1
          %s220 = smul.addr %s219, 8
          %s221 = scalar_lea.vmem [#allocation5], %s220
          %s222 = sadd.s32 %s27, 1
          %s224 = ssub.s32 128, 128
          %225 = vsyncadd %s218, %s224
          %s226 = smul.addr %s26, 2
          %s227 = sadd.s32 %s222, %s226
          %s228 = smul.addr %s227, 128
          %s229 = scalar_lea.hbm %s1, %s228
          %s231 = sshll.u32 %s221, 4
          %s232 = int_to_ptr.vmem [resolvable:$true] %s231
          %234 = dma.hbm_to_vmem [thread:$0]  %s229, 128, %s232, %s218
        $region32: #{tpu_custom_call.1} parent=23 // pred_fallthru
          _
      $region24: #{tpu_custom_call.1} parent=5 // pred_fallthru
        _
      %p235 = scmp.le.s32.totalorder 1, %s19
      %p236 = scmp.lt.s32.totalorder %s19, 3
      %p237 = pnand %p235, %p236
      %p238 = pneg %p237
      // Predicated region
      $region33: #{tpu_custom_call.1} parent=5 // pred_check
        _
      $region34: #{tpu_custom_call.1} parent=5 // pred_check_branch
        %240 = sbr.rel (%p237) target = $region36
      $region35: #{tpu_custom_call.1} parent=5 // pred_region
        %s241 = ssub.s32 %s19, 1
        %s242 = sand.u32 %s46, 1
        %s243 = scalar_lea.sflag [#allocation3], %s242
        %s244 = sand.u32 %s46, 1
        %s245 = smul.addr %s244, 8
        %s246 = scalar_lea.vmem [#allocation2], %s245
        // Predicated region
        $region37: #{tpu_custom_call.1} parent=35 // pred_check
          %p247 = pneg %p59
        $region38: #{tpu_custom_call.1} parent=35 // pred_check_branch
          %249 = sbr.rel (%p247) target = $region40
        $region39: #{tpu_custom_call.1} parent=35 // pred_region
          %250 = dma.done %s243, 128
        $region40: #{tpu_custom_call.1} parent=35 // pred_fallthru
          _
        %s251 = sand.u32 %s24, 1
        %s252 = scalar_lea.sflag [#allocation6], %s251
        %s253 = sand.u32 %s76, 1
        %s254 = smul.addr %s253, 8
        %s255 = scalar_lea.vmem [#allocation5], %s254
        // Predicated region
        $region41: #{tpu_custom_call.1} parent=35 // pred_check
          %p256 = pneg %p89
        $region42: #{tpu_custom_call.1} parent=35 // pred_check_branch
          %258 = sbr.rel (%p256) target = $region44
        $region43: #{tpu_custom_call.1} parent=35 // pred_region
          %259 = dma.done %s252, 128
        $region44: #{tpu_custom_call.1} parent=35 // pred_fallthru
          _
        // Predicated region
        $region45: #{tpu_custom_call.1} parent=35 // pred_check
          %p260 = pneg %p110
        $region46: #{tpu_custom_call.1} parent=35 // pred_check_branch
          %262 = sbr.rel (%p260) target = $region48
        $region47: #{tpu_custom_call.1} parent=35 // pred_region
          %263 = dma.done [#allocation6], 384
        $region48: #{tpu_custom_call.1} parent=35 // pred_fallthru
          _
        %s264 = sand.u32 %s46, 1
        %s265 = scalar_lea.sflag [#allocation3], %s264
        %s266 = sand.u32 %s46, 1
        %s267 = smul.addr %s266, 8
        %s268 = scalar_lea.vmem [#allocation2], %s267
        %p269 = pneg %p59
        %p270 = pneg %p56
        %s271 = sand.u32 %s24, 1
        %s272 = scalar_lea.sflag [#allocation6], %s271
        %s273 = sand.u32 %s76, 1
        %s274 = smul.addr %s273, 8
        %s275 = scalar_lea.vmem [#allocation5], %s274
        %p276 = pneg %p89
        %p277 = pneg %p86
        %p278 = pneg %p110
        %p279 = pneg %p107
        %p280 = pneg %p131
        %p281 = pneg %p128
        %p282 = pneg %p159
        %p283 = pneg %p156
        %s284 = sand.u32 %s146, 1
        %s285 = scalar_lea.sflag [#allocation4], %s284
        %s286 = sand.u32 %s146, 1
        %s287 = smul.addr %s286, 8
        %s288 = scalar_lea.vmem [#allocation8], %s287
        %s289 = sadd.s32 %s29, 1
        %v290 = vld [vmem:[%s246] sm:$0xff]
        %v291 = vld [vmem:[%s255] sm:$0xff]
        %v292 = vld [vmem:[#allocation7] sm:$0xff]
        %s293 = scalar_lea.vmem [#allocation7], 8
        %v294 = vld [vmem:[%s293] sm:$0xff]
        %297 = vrot.lane.b32.xlu0 %v290, 1
        %v298 = vpop.permute.xlu0 %297
        %299 = vrot.lane.b32.xlu0 %v291, 1
        %v300 = vpop.permute.xlu0 %299
        %vm301 = vcmask 7168
        %v302 = vsel %vm301, %v298, %v300
        %vm304 = vcmask 64512
        %v306 = vsel %vm304, %v294, 0
        %308 = vmatprep.subr.mxu0 0.0
        %309 = vmatpush1.msra.mxu0 %v302
        %310 = vmatprep.subr.mxu0 0.0
        %311 = vmatpush1.msra.mxu0 0.0
        %312 = vmatprep.subr.mxu0 0.0
        %313 = vmatpush1.msra.mxu0 0.0
        %314 = vmatprep.subr.mxu0 0.0
        %315 = vmatpush1.msra.mxu0 0.0
        %316 = vmatprep.subr.mxu0 0.0
        %317 = vmatpush1.msra.mxu0 0.0
        %318 = vmatprep.subr.mxu0 0.0
        %319 = vmatpush1.msra.mxu0 0.0
        %320 = vmatprep.subr.mxu0 0.0
        %321 = vmatpush1.msra.mxu0 0.0
        %322 = vmatprep.subr.mxu0 0.0
        %323 = vmatpush1.msra.mxu0 0.0
        %324 = vmatprep.subr.mxu0 0.0
        %325 = vmatpush1.msra.mxu0 0.0
        %326 = vmatprep.subr.mxu0 0.0
        %327 = vmatpush1.msra.mxu0 0.0
        %328 = vmatprep.subr.mxu0 0.0
        %329 = vmatpush1.msra.mxu0 0.0
        %330 = vmatprep.subr.mxu0 0.0
        %331 = vmatpush1.msra.mxu0 0.0
        %332 = vmatprep.subr.mxu0 0.0
        %333 = vmatpush1.msra.mxu0 0.0
        %334 = vmatprep.subr.mxu0 0.0
        %335 = vmatpush1.msra.mxu0 0.0
        %336 = vmatprep.subr.mxu0 0.0
        %337 = vmatpush1.msra.mxu0 0.0
        %338 = vmatprep.subr.mxu0 0.0
        %339 = vmatpush1.msra.mxu0 0.0
        %340 = vmatprep.subr.mxu0 0.0
        %341 = vmatpush1.msra.mxu0 0.0
        %342 = vmatprep.subr.mxu0 0.0
        %343 = vmatpush1.msra.mxu0 0.0
        %344 = vmatprep.subr.mxu0 0.0
        %345 = vmatpush1.msra.mxu0 0.0
        %346 = vmatprep.subr.mxu0 0.0
        %347 = vmatpush1.msra.mxu0 0.0
        %348 = vmatprep.subr.mxu0 0.0
        %349 = vmatpush1.msra.mxu0 0.0
        %350 = vmatprep.subr.mxu0 0.0
        %351 = vmatpush1.msra.mxu0 0.0
        %352 = vmatprep.subr.mxu0 0.0
        %353 = vmatpush1.msra.mxu0 0.0
        %354 = vmatprep.subr.mxu0 0.0
        %355 = vmatpush1.msra.mxu0 0.0
        %356 = vmatprep.subr.mxu0 0.0
        %357 = vmatpush1.msra.mxu0 0.0
        %358 = vmatprep.subr.mxu0 0.0
        %359 = vmatpush1.msra.mxu0 0.0
        %360 = vmatprep.subr.mxu0 0.0
        %361 = vmatpush1.msra.mxu0 0.0
        %362 = vmatprep.subr.mxu0 0.0
        %363 = vmatpush1.msra.mxu0 0.0
        %364 = vmatprep.subr.mxu0 0.0
        %365 = vmatpush1.msra.mxu0 0.0
        %366 = vmatprep.subr.mxu0 0.0
        %367 = vmatpush1.msra.mxu0 0.0
        %368 = vmatprep.subr.mxu0 0.0
        %369 = vmatpush1.msra.mxu0 0.0
        %370 = vmatprep.subr.mxu0 0.0
        %371 = vmatpush1.msra.mxu0 0.0
        %372 = vmatprep.mubr.f32.mxu0 0.0
        %373 = vmatmul.mubr.f32.gmra.mrb[0].mxu0 %v306
        %v374 = vpop.f32.mrb[0].mxu0
        %v375 = vadd.f32 0.0, %v374
        %v376 = vpop.f32.mrb[0].mxu0
        %377 = vdwg.mxu0
        %378 = vrot.lane.b32.xlu0 %v290, 2
        %v379 = vpop.permute.xlu0 %378
        %380 = vrot.lane.b32.xlu0 %v291, 2
        %v381 = vpop.permute.xlu0 %380
        %vm382 = vcmask 15360
        %v383 = vsel %vm382, %v379, %v381
        %v386 = vsel %vm304, %v292, 0
        %388 = vmatprep.subr.mxu0 0.0
        %389 = vmatpush1.msra.mxu0 %v383
        %390 = vmatprep.subr.mxu0 0.0
        %391 = vmatpush1.msra.mxu0 0.0
        %392 = vmatprep.subr.mxu0 0.0
        %393 = vmatpush1.msra.mxu0 0.0
        %394 = vmatprep.subr.mxu0 0.0
        %395 = vmatpush1.msra.mxu0 0.0
        %396 = vmatprep.subr.mxu0 0.0
        %397 = vmatpush1.msra.mxu0 0.0
        %398 = vmatprep.subr.mxu0 0.0
        %399 = vmatpush1.msra.mxu0 0.0
        %400 = vmatprep.subr.mxu0 0.0
        %401 = vmatpush1.msra.mxu0 0.0
        %402 = vmatprep.subr.mxu0 0.0
        %403 = vmatpush1.msra.mxu0 0.0
        %404 = vmatprep.subr.mxu0 0.0
        %405 = vmatpush1.msra.mxu0 0.0
        %406 = vmatprep.subr.mxu0 0.0
        %407 = vmatpush1.msra.mxu0 0.0
        %408 = vmatprep.subr.mxu0 0.0
        %409 = vmatpush1.msra.mxu0 0.0
        %410 = vmatprep.subr.mxu0 0.0
        %411 = vmatpush1.msra.mxu0 0.0
        %412 = vmatprep.subr.mxu0 0.0
        %413 = vmatpush1.msra.mxu0 0.0
        %414 = vmatprep.subr.mxu0 0.0
        %415 = vmatpush1.msra.mxu0 0.0
        %416 = vmatprep.subr.mxu0 0.0
        %417 = vmatpush1.msra.mxu0 0.0
        %418 = vmatprep.subr.mxu0 0.0
        %419 = vmatpush1.msra.mxu0 0.0
        %420 = vmatprep.subr.mxu0 0.0
        %421 = vmatpush1.msra.mxu0 0.0
        %422 = vmatprep.subr.mxu0 0.0
        %423 = vmatpush1.msra.mxu0 0.0
        %424 = vmatprep.subr.mxu0 0.0
        %425 = vmatpush1.msra.mxu0 0.0
        %426 = vmatprep.subr.mxu0 0.0
        %427 = vmatpush1.msra.mxu0 0.0
        %428 = vmatprep.subr.mxu0 0.0
        %429 = vmatpush1.msra.mxu0 0.0
        %430 = vmatprep.subr.mxu0 0.0
        %431 = vmatpush1.msra.mxu0 0.0
        %432 = vmatprep.subr.mxu0 0.0
        %433 = vmatpush1.msra.mxu0 0.0
        %434 = vmatprep.subr.mxu0 0.0
        %435 = vmatpush1.msra.mxu0 0.0
        %436 = vmatprep.subr.mxu0 0.0
        %437 = vmatpush1.msra.mxu0 0.0
        %438 = vmatprep.subr.mxu0 0.0
        %439 = vmatpush1.msra.mxu0 0.0
        %440 = vmatprep.subr.mxu0 0.0
        %441 = vmatpush1.msra.mxu0 0.0
        %442 = vmatprep.subr.mxu0 0.0
        %443 = vmatpush1.msra.mxu0 0.0
        %444 = vmatprep.subr.mxu0 0.0
        %445 = vmatpush1.msra.mxu0 0.0
        %446 = vmatprep.subr.mxu0 0.0
        %447 = vmatpush1.msra.mxu0 0.0
        %448 = vmatprep.subr.mxu0 0.0
        %449 = vmatpush1.msra.mxu0 0.0
        %450 = vmatprep.subr.mxu0 0.0
        %451 = vmatpush1.msra.mxu0 0.0
        %452 = vmatprep.mubr.f32.mxu0 0.0
        %453 = vmatmul.mubr.f32.gmra.mrb[0].mxu0 %v386
        %v454 = vpop.f32.mrb[0].mxu0
        %v455 = vadd.f32 %v375, %v454
        %v456 = vpop.f32.mrb[0].mxu0
        %457 = vdwg.mxu0
        %s458 = scalar_lea.vmem [#allocation7], 16
        %v459 = vld [vmem:[%s458] sm:$0xff]
        %v461 = vsel %vm304, %v459, 0
        %463 = vmatprep.subr.mxu0 0.0
        %464 = vmatpush1.msra.mxu0 %v291
        %465 = vmatprep.subr.mxu0 0.0
        %466 = vmatpush1.msra.mxu0 0.0
        %467 = vmatprep.subr.mxu0 0.0
        %468 = vmatpush1.msra.mxu0 0.0
        %469 = vmatprep.subr.mxu0 0.0
        %470 = vmatpush1.msra.mxu0 0.0
        %471 = vmatprep.subr.mxu0 0.0
        %472 = vmatpush1.msra.mxu0 0.0
        %473 = vmatprep.subr.mxu0 0.0
        %474 = vmatpush1.msra.mxu0 0.0
        %475 = vmatprep.subr.mxu0 0.0
        %476 = vmatpush1.msra.mxu0 0.0
        %477 = vmatprep.subr.mxu0 0.0
        %478 = vmatpush1.msra.mxu0 0.0
        %479 = vmatprep.subr.mxu0 0.0
        %480 = vmatpush1.msra.mxu0 0.0
        %481 = vmatprep.subr.mxu0 0.0
        %482 = vmatpush1.msra.mxu0 0.0
        %483 = vmatprep.subr.mxu0 0.0
        %484 = vmatpush1.msra.mxu0 0.0
        %485 = vmatprep.subr.mxu0 0.0
        %486 = vmatpush1.msra.mxu0 0.0
        %487 = vmatprep.subr.mxu0 0.0
        %488 = vmatpush1.msra.mxu0 0.0
        %489 = vmatprep.subr.mxu0 0.0
        %490 = vmatpush1.msra.mxu0 0.0
        %491 = vmatprep.subr.mxu0 0.0
        %492 = vmatpush1.msra.mxu0 0.0
        %493 = vmatprep.subr.mxu0 0.0
        %494 = vmatpush1.msra.mxu0 0.0
        %495 = vmatprep.subr.mxu0 0.0
        %496 = vmatpush1.msra.mxu0 0.0
        %497 = vmatprep.subr.mxu0 0.0
        %498 = vmatpush1.msra.mxu0 0.0
        %499 = vmatprep.subr.mxu0 0.0
        %500 = vmatpush1.msra.mxu0 0.0
        %501 = vmatprep.subr.mxu0 0.0
        %502 = vmatpush1.msra.mxu0 0.0
        %503 = vmatprep.subr.mxu0 0.0
        %504 = vmatpush1.msra.mxu0 0.0
        %505 = vmatprep.subr.mxu0 0.0
        %506 = vmatpush1.msra.mxu0 0.0
        %507 = vmatprep.subr.mxu0 0.0
        %508 = vmatpush1.msra.mxu0 0.0
        %509 = vmatprep.subr.mxu0 0.0
        %510 = vmatpush1.msra.mxu0 0.0
        %511 = vmatprep.subr.mxu0 0.0
        %512 = vmatpush1.msra.mxu0 0.0
        %513 = vmatprep.subr.mxu0 0.0
        %514 = vmatpush1.msra.mxu0 0.0
        %515 = vmatprep.subr.mxu0 0.0
        %516 = vmatpush1.msra.mxu0 0.0
        %517 = vmatprep.subr.mxu0 0.0
        %518 = vmatpush1.msra.mxu0 0.0
        %519 = vmatprep.subr.mxu0 0.0
        %520 = vmatpush1.msra.mxu0 0.0
        %521 = vmatprep.subr.mxu0 0.0
        %522 = vmatpush1.msra.mxu0 0.0
        %523 = vmatprep.subr.mxu0 0.0
        %524 = vmatpush1.msra.mxu0 0.0
        %525 = vmatprep.subr.mxu0 0.0
        %526 = vmatpush1.msra.mxu0 0.0
        %527 = vmatprep.mubr.f32.mxu0 0.0
        %528 = vmatmul.mubr.f32.gmra.mrb[0].mxu0 %v461
        %v529 = vpop.f32.mrb[0].mxu0
        %v530 = vadd.f32 0.0, %v529
        %v531 = vpop.f32.mrb[0].mxu0
        %532 = vdwg.mxu0
        %v533 = vadd.f32 %v455, %v530
        %v534 = vld [vmem:[%s3] sm:$0xff]
        %536 = vset.pattern.permute.xlu0 0
        %537 = vperm.xlu0 %536, %v534
        %v538 = vpop.permute.xlu0 %537
        %v540 = vadd.f32 %v533, %v538
        %541 = vst [vmem:[%s288] sm:$0xff] %v540
        %s542 = sand.u32 %s146, 1
        %s543 = scalar_lea.sflag [#allocation4], %s542
        %s544 = sand.u32 %s146, 1
        %s545 = smul.addr %s544, 8
        %s546 = scalar_lea.vmem [#allocation8], %s545
        // Predicated region
        $region49: #{tpu_custom_call.1} parent=35 // pred_check
          %p547 = pneg %p156
        $region50: #{tpu_custom_call.1} parent=35 // pred_check_branch
          %549 = sbr.rel (%p547) target = $region52
        $region51: #{tpu_custom_call.1} parent=35 // pred_region
          %s551 = ssub.s32 128, 128
          %552 = vsyncadd %s543, %s551
          %s553 = sadd.s32 %s29, %s28
          %s554 = smul.addr %s553, 128
          %s555 = scalar_lea.hbm %s4, %s554
          %s557 = sshll.u32 %s546, 4
          %s558 = int_to_ptr.vmem [resolvable:$true] %s557
          %560 = dma.vmem_to_hbm [thread:$0]  %s558, 128, %s555, %s543
        $region52: #{tpu_custom_call.1} parent=35 // pred_fallthru
          _
      $region36: #{tpu_custom_call.1} parent=5 // pred_fallthru
        _
      %p561 = scmp.le.s32.totalorder 2, %s19
      // Predicated region
      $region53: #{tpu_custom_call.1} parent=5 // pred_check
        %p562 = pneg %p561
      $region54: #{tpu_custom_call.1} parent=5 // pred_check_branch
        %564 = sbr.rel (%p562) target = $region56
      $region55: #{tpu_custom_call.1} parent=5 // pred_region
        %s565 = ssub.s32 %s19, 2
        // Predicated region
        $region57: #{tpu_custom_call.1} parent=55 // pred_check
          %p566 = pneg %p162
        $region58: #{tpu_custom_call.1} parent=55 // pred_check_branch
          %568 = sbr.rel (%p566) target = $region60
        $region59: #{tpu_custom_call.1} parent=55 // pred_region
          %s569 = sand.u32 %s147, 1
          %s570 = scalar_lea.sflag [#allocation4], %s569
          %s571 = sand.u32 %s147, 1
          %s572 = smul.addr %s571, 8
          %s573 = scalar_lea.vmem [#allocation8], %s572
          %574 = dma.done %s570, 128
        $region60: #{tpu_custom_call.1} parent=55 // pred_fallthru
          _
      $region56: #{tpu_custom_call.1} parent=5 // pred_fallthru
        _
    $region6: #{tpu_custom_call.1} parent=1 // loop_footer
      %s23 = sadd.s32 1, %s19
    $region7: #{tpu_custom_call.1} parent=1 // loop_footer_branch
      %18 = sbr.rel target = $region3
    $region8: #{tpu_custom_call.1} parent=1 // loop_exit
      _
    %575 = vsyncpa [#allocation3], 1
    %s576 = scalar_lea.sflag [#allocation3], 1
    %577 = vsyncpa %s576, 1
    %578 = vsyncpa [#allocation6], 1
    %s579 = scalar_lea.sflag [#allocation6], 1
    %580 = vsyncpa %s579, 1
    %581 = vsyncpa [#allocation4], 1
    %s582 = scalar_lea.sflag [#allocation4], 1
    %583 = vsyncpa %s582, 1

</llo_original>
